<compile_context>
chip_gen: v5e
topology: v5e:2x2
jax: 0.10.0
libtpu: 0.0.40
codegen_flags: <defaults>
</compile_context>

<pallas_src>
import functools

import jax
import jax.numpy as jnp
from jax.experimental import pallas as pl
from jax.experimental.pallas import tpu as pltpu


def _label_smoothing_kernel(
    x_ref, t_ref, out_ref, acc_ref, *,
    confidence, smoothing, n_rows, row_tile, tiles_per_part, inv_n,
):
    i = pl.program_id(1)                 # row-tile step within this partition

    @pl.when(i == 0)
    def _init():
        acc_ref[...] = jnp.zeros_like(acc_ref)

    x = x_ref[...].astype(jnp.float32)   # (TR, C): upcast after load
    t = t_ref[...]                       # (TR, 1) int32 targets
    rt, c = x.shape

    # Numerically stable per-row logsumexp (lane reductions: max, sum-exp).
    m = jnp.max(x, axis=-1, keepdims=True)
    se = jnp.sum(jnp.exp(x - m), axis=-1, keepdims=True)
    lse = m + jnp.log(se)                                  # (TR, 1)

    # Fused smoothed loss: w = confidence*onehot + smoothing/C, sum(w) == 1
    #   loss_row = -sum(logprobs * w) = logsumexp(x) - sum(x * w)
    col = jax.lax.broadcasted_iota(jnp.int32, (rt, c), 1)
    w = jnp.where(col == t,
                  jnp.float32(confidence + smoothing / c),
                  jnp.float32(smoothing / c))
    wsum = jnp.sum(x * w, axis=-1, keepdims=True)          # (TR, 1)
    loss = lse - wsum                                      # (TR, 1)

    # Mask rows past the true row count (ragged last tile / surplus tiles).
    tile_idx = pl.program_id(0) * tiles_per_part + i
    row = tile_idx * row_tile + jax.lax.broadcasted_iota(jnp.int32, (rt, 1), 0)
    loss = jnp.where(row < n_rows, loss, 0.0)

    acc_ref[...] += jnp.sum(loss, axis=0, keepdims=True)   # (1, 1) running sum

    @pl.when(i == tiles_per_part - 1)
    def _finalize():
        # Lane-dense (8,128) block; only element [0,0] carries the partial.
        r8 = jax.lax.broadcasted_iota(jnp.int32, (8, 128), 0)
        c128 = jax.lax.broadcasted_iota(jnp.int32, (8, 128), 1)
        sel = jnp.logical_and(r8 == 0, c128 == 0)
        out_ref[...] = jnp.where(sel, acc_ref[...] * inv_n, 0.0)


def _choose_row_tile(n, c, itemsize, requested=None):
    if requested is None:
        # ~2 MiB of logits per block in native dtype; with 2x pipeline buffers
        # this fits the default scoped VMEM on v5e (16 MiB), v6e and v7x.
        tr = (2 * 1024 * 1024) // max(1, c * itemsize)
    else:
        tr = requested
    tr = max(8, min(int(tr), 4096))
    tr -= tr % 8                 # keep the block row dim a multiple of 8
    if tr >= n:
        return n                 # one full-rows block (full dim always legal)
    return tr


def label_smoothing_loss(x, target, smoothing=0.1, *, row_tile=None):
    """x: (N, C) float logits (f32/bf16), target: (N,) int labels -> () f32."""
    n, c = x.shape
    confidence = 1.0 - smoothing
    t2d = target.astype(jnp.int32).reshape(n, 1)

    row_tile = _choose_row_tile(n, c, x.dtype.itemsize, row_tile)
    tiles = pl.cdiv(n, row_tile)
    # Leading 'parallel' axis: a 2-TensorCore chip (v7x) splits the row tiles
    # across cores; on single-TC chips it is just a 2-iteration outer loop.
    num_parts = 2 if tiles >= 2 else 1
    tiles_per_part = pl.cdiv(tiles, num_parts)

    kernel = functools.partial(
        _label_smoothing_kernel,
        confidence=confidence,
        smoothing=smoothing,
        n_rows=n,
        row_tile=row_tile,
        tiles_per_part=tiles_per_part,
        inv_n=1.0 / n,
    )

    def row_block(p, i):
        # Clamp so surplus tiles (masked to zero in-kernel) re-read a valid block.
        return (jnp.minimum(p * tiles_per_part + i, tiles - 1), 0)

    out = pl.pallas_call(
        kernel,
        out_shape=jax.ShapeDtypeStruct((num_parts * 8, 128), jnp.float32),
        grid_spec=pltpu.PrefetchScalarGridSpec(
            num_scalar_prefetch=0,
            grid=(num_parts, tiles_per_part),
            in_specs=[
                pl.BlockSpec((row_tile, c), row_block),   # logits tile
                pl.BlockSpec((row_tile, 1), row_block),   # targets tile
            ],
            out_specs=pl.BlockSpec((8, 128), lambda p, i: (p, 0)),
            scratch_shapes=[pltpu.VMEM((1, 1), jnp.float32)],
        ),
        compiler_params=pltpu.CompilerParams(
            dimension_semantics=("parallel", "arbitrary"),
            vmem_limit_bytes=32 * 1024 * 1024,
        ),
    )(x, t2d)
    # Per-partition partial means sit at out[8*p, 0]; everything else is 0.
    return jnp.sum(out)


def _reference(x, target, smoothing=0.1):
    confidence = 1.0 - smoothing
    logprobs = jax.nn.log_softmax(x.astype(jnp.float32), axis=-1)
    nll = -jnp.take_along_axis(logprobs, target[:, None], axis=-1)[:, 0]
    smooth = -jnp.mean(logprobs, axis=-1)
    return jnp.mean(confidence * nll + smoothing * smooth)


if __name__ == "__main__":
    key = jax.random.PRNGKey(0)
    kx, kt = jax.random.split(key)
    N, C = 400, 128
    x = jax.random.normal(kx, (N, C), dtype=jnp.float32)
    target = jax.random.randint(kt, (N,), 0, C, dtype=jnp.int32)

    # Small explicit row tile so the grid / accumulator / masking paths
    # (including the surplus tile in partition 1) are actually exercised.
    loss = label_smoothing_loss(x, target, smoothing=0.1, row_tile=64)
    loss = jax.block_until_ready(loss)
    ref = _reference(x, target, smoothing=0.1)
    assert jnp.allclose(loss, ref, rtol=1e-5, atol=1e-5), (loss, ref)

    # Native bf16 logits path: loaded as bf16, upcast to f32 inside the kernel.
    xb = x.astype(jnp.bfloat16)
    loss_b = jax.block_until_ready(label_smoothing_loss(xb, target, smoothing=0.1))
    ref_b = _reference(xb, target, smoothing=0.1)
    assert jnp.allclose(loss_b, ref_b, rtol=1e-3, atol=1e-3), (loss_b, ref_b)

    print("KERNEL_OK")
</pallas_src>

<mosaic_0001>
module attributes {stable_mosaic.version = 11 : i64} {
  func.func @_label_smoothing_kernel(%arg0: i32, %arg1: i32, %arg2: memref<64x128xf32, #tpu.memory_space<vmem>>, %arg3: memref<64x1xi32, #tpu.memory_space<vmem>>, %arg4: memref<8x128xf32, #tpu.memory_space<vmem>>, %arg5: memref<1x1xf32, #tpu.memory_space<vmem>>) attributes {dimension_semantics = [#tpu.dimension_semantics<parallel>, #tpu.dimension_semantics<arbitrary>], iteration_bounds = array<i64: 2, 4>, scalar_prefetch = 0 : i64, scratch_operands = 1 : i64, tpu.core_type = #tpu.core_type<tc>, window_params = [{transform_indices = @transform_0, window_bounds = array<i64: 64, 128>}, {transform_indices = @transform_1, window_bounds = array<i64: 64, 1>}, {transform_indices = @transform_2, window_bounds = array<i64: 8, 128>}]} {
    %c0_i32 = arith.constant 0 : i32
    %0 = arith.cmpi eq, %arg1, %c0_i32 : i32
    %1 = arith.extui %0 : i1 to i32
    %c0_i32_0 = arith.constant 0 : i32
    %2 = arith.cmpi ne, %1, %c0_i32_0 : i32
    scf.if %2 {
      %cst_15 = arith.constant 0.000000e+00 : f32
      %42 = vector.broadcast %cst_15 : f32 to vector<1x1xf32>
      %c0_16 = arith.constant 0 : index
      %c0_17 = arith.constant 0 : index
      %43 = vector.load %arg5[%c0_16, %c0_17] : memref<1x1xf32, #tpu.memory_space<vmem>>, vector<1x1xf32>
      tpu.vector_store %arg5[%c0_16, %c0_17], %42 {strides = array<i32>} : memref<1x1xf32, #tpu.memory_space<vmem>>, vector<1x1xf32>,
    } else {
    }
    %c0 = arith.constant 0 : index
    %c0_1 = arith.constant 0 : index
    %3 = vector.load %arg2[%c0, %c0_1] : memref<64x128xf32, #tpu.memory_space<vmem>>, vector<64x128xf32>
    %c0_2 = arith.constant 0 : index
    %c0_3 = arith.constant 0 : index
    %4 = vector.load %arg3[%c0_2, %c0_3] : memref<64x1xi32, #tpu.memory_space<vmem>>, vector<64x1xi32>
    %cst = arith.constant dense<0xFF800000> : vector<64xf32>
    %5 = vector.multi_reduction <maximumf>, %3, %cst [1] : vector<64x128xf32> to vector<64xf32>
    %6 = vector.shape_cast %5 : vector<64xf32> to vector<64x1xf32>
    %7 = vector.broadcast %6 : vector<64x1xf32> to vector<64x128xf32>
    %8 = arith.subf %3, %7 : vector<64x128xf32>
    %9 = math.exp %8 : vector<64x128xf32>
    %cst_4 = arith.constant dense<0.000000e+00> : vector<64xf32>
    %10 = vector.multi_reduction <add>, %9, %cst_4 [1] : vector<64x128xf32> to vector<64xf32>
    %11 = vector.shape_cast %10 : vector<64xf32> to vector<64x1xf32>
    %12 = math.log %11 : vector<64x1xf32>
    %13 = arith.addf %6, %12 : vector<64x1xf32>
    %14 = tpu.iota {dimensions = array<i32: 1>} : vector<64x128xi32>
    %15 = vector.broadcast %4 : vector<64x1xi32> to vector<64x128xi32>
    %16 = arith.cmpi eq, %14, %15 : vector<64x128xi32>
    %cst_5 = arith.constant 0.900781273 : f32
    %cst_6 = arith.constant 7.812500e-04 : f32
    %17 = vector.broadcast %cst_5 : f32 to vector<64x128xf32>
    %18 = vector.broadcast %cst_6 : f32 to vector<64x128xf32>
    %19 = arith.select %16, %17, %18 : vector<64x128xi1>, vector<64x128xf32>
    %20 = arith.mulf %3, %19 : vector<64x128xf32>
    %cst_7 = arith.constant dense<0.000000e+00> : vector<64xf32>
    %21 = vector.multi_reduction <add>, %20, %cst_7 [1] : vector<64x128xf32> to vector<64xf32>
    %22 = vector.shape_cast %21 : vector<64xf32> to vector<64x1xf32>
    %23 = arith.subf %13, %22 : vector<64x1xf32>
    %c4_i32 = arith.constant 4 : i32
    %24 = arith.muli %arg0, %c4_i32 : i32
    %25 = arith.addi %24, %arg1 : i32
    %c64_i32 = arith.constant 64 : i32
    %26 = arith.muli %25, %c64_i32 : i32
    %27 = tpu.iota {dimensions = array<i32: 0>} : vector<64x1xi32>
    %28 = vector.broadcast %26 : i32 to vector<64x1xi32>
    %29 = arith.addi %28, %27 : vector<64x1xi32>
    %c400_i32 = arith.constant 400 : i32
    %30 = vector.broadcast %c400_i32 : i32 to vector<64x1xi32>
    %31 = arith.cmpi slt, %29, %30 : vector<64x1xi32>
    %cst_8 = arith.constant 0.000000e+00 : f32
    %32 = vector.broadcast %cst_8 : f32 to vector<64x1xf32>
    %33 = arith.select %31, %23, %32 : vector<64x1xi1>, vector<64x1xf32>
    %c0_9 = arith.constant 0 : index
    %c0_10 = arith.constant 0 : index
    %34 = vector.load %arg5[%c0_9, %c0_10] : memref<1x1xf32, #tpu.memory_space<vmem>>, vector<1x1xf32>
    %cst_11 = arith.constant dense<0.000000e+00> : vector<1xf32>
    %35 = vector.multi_reduction <add>, %33, %cst_11 [0] : vector<64x1xf32> to vector<1xf32>
    %36 = vector.shape_cast %35 : vector<1xf32> to vector<1x1xf32>
    %37 = arith.addf %34, %36 : vector<1x1xf32>
    %c0_12 = arith.constant 0 : index
    %c0_13 = arith.constant 0 : index
    %38 = vector.load %arg5[%c0_12, %c0_13] : memref<1x1xf32, #tpu.memory_space<vmem>>, vector<1x1xf32>
    tpu.vector_store %arg5[%c0_12, %c0_13], %37 {strides = array<i32>} : memref<1x1xf32, #tpu.memory_space<vmem>>, vector<1x1xf32>,
    %c3_i32 = arith.constant 3 : i32
    %39 = arith.cmpi eq, %arg1, %c3_i32 : i32
    %40 = arith.extui %39 : i1 to i32
    %c0_i32_14 = arith.constant 0 : i32
    %41 = arith.cmpi ne, %40, %c0_i32_14 : i32
    scf.if %41 {
      %42 = tpu.iota {dimensions = array<i32: 0>} : vector<8x128xi32>
      %43 = tpu.iota {dimensions = array<i32: 1>} : vector<8x128xi32>
      %c0_i32_15 = arith.constant 0 : i32
      %44 = vector.broadcast %c0_i32_15 : i32 to vector<8x128xi32>
      %45 = arith.cmpi eq, %42, %44 : vector<8x128xi32>
      %c0_i32_16 = arith.constant 0 : i32
      %46 = vector.broadcast %c0_i32_16 : i32 to vector<8x128xi32>
      %47 = arith.cmpi eq, %43, %46 : vector<8x128xi32>
      %48 = arith.andi %45, %47 : vector<8x128xi1>
      %c0_17 = arith.constant 0 : index
      %c0_18 = arith.constant 0 : index
      %49 = vector.load %arg5[%c0_17, %c0_18] : memref<1x1xf32, #tpu.memory_space<vmem>>, vector<1x1xf32>
      %cst_19 = arith.constant 2.500000e-03 : f32
      %50 = vector.broadcast %cst_19 : f32 to vector<1x1xf32>
      %51 = arith.mulf %49, %50 : vector<1x1xf32>
      %cst_20 = arith.constant 0.000000e+00 : f32
      %52 = vector.shape_cast %51 : vector<1x1xf32> to vector<1x1xf32>
      %53 = vector.broadcast %52 : vector<1x1xf32> to vector<8x128xf32>
      %54 = vector.broadcast %cst_20 : f32 to vector<8x128xf32>
      %55 = arith.select %48, %53, %54 : vector<8x128xi1>, vector<8x128xf32>
      %c0_21 = arith.constant 0 : index
      %c0_22 = arith.constant 0 : index
      %56 = vector.load %arg4[%c0_21, %c0_22] : memref<8x128xf32, #tpu.memory_space<vmem>>, vector<8x128xf32>
      tpu.vector_store %arg4[%c0_21, %c0_22], %55 {strides = array<i32>} : memref<8x128xf32, #tpu.memory_space<vmem>>, vector<8x128xf32>,
    } else {
    }
    return
  }
  func.func @transform_0(%arg0: i32, %arg1: i32) -> (i32, i32) {
    %c4_i32 = arith.constant 4 : i32
    %0 = arith.muli %arg0, %c4_i32 : i32
    %1 = arith.addi %0, %arg1 : i32
    %c6_i32 = arith.constant 6 : i32
    %2 = arith.minsi %1, %c6_i32 : i32
    %c0_i32 = arith.constant 0 : i32
    %c0_i32_0 = arith.constant 0 : i32
    return %2, %c0_i32 : i32, i32
  }
  func.func @transform_1(%arg0: i32, %arg1: i32) -> (i32, i32) {
    %c4_i32 = arith.constant 4 : i32
    %0 = arith.muli %arg0, %c4_i32 : i32
    %1 = arith.addi %0, %arg1 : i32
    %c6_i32 = arith.constant 6 : i32
    %2 = arith.minsi %1, %c6_i32 : i32
    %c0_i32 = arith.constant 0 : i32
    %c0_i32_0 = arith.constant 0 : i32
    return %2, %c0_i32 : i32, i32
  }
  func.func @transform_2(%arg0: i32, %arg1: i32) -> (i32, i32) {
    %c0_i32 = arith.constant 0 : i32
    %c0_i32_0 = arith.constant 0 : i32
    return %arg0, %c0_i32 : i32, i32
  }
}

</mosaic_0001>

<llo_original>
// kernel: tpu_custom_call.1
$region0: #{tpu_custom_call.1}
  #allocation0 [shape = 'u32[]', space=smem, size = 0x4, offset = 0x4, fixed_abs, tag = 'smem constant byte address 0x4 - core index']
  #allocation1 [shape = 'u32[72,128]{1,0:T(1,128)}', space=vmem, size = 0x9000, scoped, tag = 'internal scratch']
  #allocation2 [shape = 'f32[1,1]{1,0:T(1,128)}', space=vmem, size = 0x200, scoped, tag = 'scratch operand']
  %s0 = inlined_call_operand.vmem [shape: f32[400,128], index: 0, kind: input, shape index: {}]
  %s1 = inlined_call_operand.vmem [shape: s32[400,1], index: 1, kind: input, shape index: {}]
  %s2 = inlined_call_operand.hbm [shape: f32[16,128], index: 2, kind: output, shape index: {}]
  %s3 = sld [smem:[#allocation0]]
  $region49: #{tpu_custom_call.1} parent=0
    _
  %s5 = ssub.s32 1, %s3
  %s6 = scalar_select 0, %s5, %s3
  $region1: #{tpu_custom_call.1} parent=0
    #allocation3 [shape = 'u8[8192]{0}', space=vmem, size = 0x2000, scoped, tag = 'output window, operand 0']
    #allocation4 [shape = 's32[2]{0}', space=sflag, size = 0x8, scoped, tag = 'scoped memory for tpu_custom_call.1']
    %7 = vsyncpa [#allocation4], 0
    %s8 = scalar_lea.sflag [#allocation4], 1
    %9 = vsyncpa %s8, 0
    loop: start=0, step=1, limit=10
    $region2: #{tpu_custom_call.1} parent=1 // loop_pre_header
      _
    $region3: #{tpu_custom_call.1} parent=1 // loop_header
      %s11 = sphi 0, %s15
      %p12 = scmp.ge.s32.totalorder %s11, 10
      %s18 = sphi 0, %s30
      %s19 = sphi 0, %s26
      %s20 = sphi 0, %s18
      %s21 = sphi 0, %s19
      %s22 = sphi 0, %s20
      %s23 = sphi 0, %s21
      %s41 = sphi 0, %s43
      %s44 = sphi 0, %s41
      %s45 = sphi 0, %s44
      %s61 = sphi 0, %s45
      %s75 = sphi 0, %s77
      %s78 = sphi 0, %s75
      %s79 = sphi 0, %s78
      %s95 = sphi 0, %s79
      %s101 = sphi 0, %s103
      %s104 = sphi 0, %s101
      %s105 = sphi 0, %s104
      %s121 = sphi 0, %s105
    $region4: #{tpu_custom_call.1} parent=1 // loop_header_branch
      %14 = sbr.rel (%p12) target = $region8
    $region5: #{tpu_custom_call.1} parent=1 // loop_body
      %s16 = ssub.s32 %s11, 1
      %s17 = ssub.s32 %s11, 2
      %s24 = sadd.s32 1, %s19
      %p25 = scmp.ge.s32.totalorder %s24, 4
      %s26 = scalar_select %p25, 0, %s24
      %s27 = sadd.s32 1, %s18
      %s28 = scalar_select %p25, %s27, %s18
      %p29 = scmp.ge.s32.totalorder %s28, 2
      %s30 = scalar_select %p29, 0, %s28
      %s31 = smul.u32 %s18, 4
      %s32 = sadd.s32 %s31, %s19
      %p33 = scmp.lt.s32.totalorder %s32, 6
      %s34 = scalar_select %p33, %s32, 6
      %s35 = smul.u32 %s30, 4
      %s36 = sadd.s32 %s35, %s26
      %p37 = scmp.lt.s32.totalorder %s36, 6
      %s38 = scalar_select %p37, %s36, 6
      %s39 = ssub.s32 %s34, %s38
      %p40 = scmp.eq.s32.totalorder %s39, 0
      %s42 = sadd.s32 %s41, 1
      %s43 = scalar_select %p40, %s41, %s42
      %p46 = pneg %p40
      %p47 = scmp.eq.s32.totalorder %s11, 7
      %p48 = por %p46, %p47
      %p49 = scmp.ne.s32.totalorder %s41, %s44
      %p50 = scmp.eq.s32.totalorder %s11, 0
      %p51 = por %p49, %p50
      %p52 = scmp.ne.s32.totalorder %s41, %s44
      %p53 = scmp.eq.s32.totalorder %s16, 7
      %p54 = por %p52, %p53
      %p55 = scmp.ne.s32.totalorder %s44, %s45
      %p56 = scmp.eq.s32.totalorder %s16, 0
      %p57 = por %p55, %p56
      %p58 = scmp.ne.s32.totalorder %s44, %s45
      %p59 = scmp.eq.s32.totalorder %s17, 7
      %p60 = por %p58, %p59
      %p62 = scmp.ne.s32.totalorder %s45, %s61
      %p63 = scmp.eq.s32.totalorder %s17, 0
      %p64 = por %p62, %p63
      %s65 = smul.u32 %s18, 4
      %s66 = sadd.s32 %s65, %s19
      %p67 = scmp.lt.s32.totalorder %s66, 6
      %s68 = scalar_select %p67, %s66, 6
      %s69 = smul.u32 %s30, 4
      %s70 = sadd.s32 %s69, %s26
      %p71 = scmp.lt.s32.totalorder %s70, 6
      %s72 = scalar_select %p71, %s70, 6
      %s73 = ssub.s32 %s68, %s72
      %p74 = scmp.eq.s32.totalorder %s73, 0
      %s76 = sadd.s32 %s75, 1
      %s77 = scalar_select %p74, %s75, %s76
      %p80 = pneg %p74
      %p81 = scmp.eq.s32.totalorder %s11, 7
      %p82 = por %p80, %p81
      %p83 = scmp.ne.s32.totalorder %s75, %s78
      %p84 = scmp.eq.s32.totalorder %s11, 0
      %p85 = por %p83, %p84
      %p86 = scmp.ne.s32.totalorder %s75, %s78
      %p87 = scmp.eq.s32.totalorder %s16, 7
      %p88 = por %p86, %p87
      %p89 = scmp.ne.s32.totalorder %s78, %s79
      %p90 = scmp.eq.s32.totalorder %s16, 0
      %p91 = por %p89, %p90
      %p92 = scmp.ne.s32.totalorder %s78, %s79
      %p93 = scmp.eq.s32.totalorder %s17, 7
      %p94 = por %p92, %p93
      %p96 = scmp.ne.s32.totalorder %s79, %s95
      %p97 = scmp.eq.s32.totalorder %s17, 0
      %p98 = por %p96, %p97
      %s99 = ssub.s32 %s18, %s30
      %p100 = scmp.eq.s32.totalorder %s99, 0
      %s102 = sadd.s32 %s101, 1
      %s103 = scalar_select %p100, %s101, %s102
      %p106 = pneg %p100
      %p107 = scmp.eq.s32.totalorder %s11, 7
      %p108 = por %p106, %p107
      %p109 = scmp.ne.s32.totalorder %s101, %s104
      %p110 = scmp.eq.s32.totalorder %s11, 0
      %p111 = por %p109, %p110
      %p112 = scmp.ne.s32.totalorder %s101, %s104
      %p113 = scmp.eq.s32.totalorder %s16, 7
      %p114 = por %p112, %p113
      %p115 = scmp.ne.s32.totalorder %s104, %s105
      %p116 = scmp.eq.s32.totalorder %s16, 0
      %p117 = por %p115, %p116
      %p118 = scmp.ne.s32.totalorder %s104, %s105
      %p119 = scmp.eq.s32.totalorder %s17, 7
      %p120 = por %p118, %p119
      %p122 = scmp.ne.s32.totalorder %s105, %s121
      %p123 = scmp.eq.s32.totalorder %s17, 0
      %p124 = por %p122, %p123
      %p125 = scmp.le.s32.totalorder 1, %s11
      %p126 = scmp.lt.s32.totalorder %s11, 9
      %p127 = pnand %p125, %p126
      %p128 = pneg %p127
      // Predicated region
      $region9: #{tpu_custom_call.1} parent=5 // pred_check
        _
      $region10: #{tpu_custom_call.1} parent=5 // pred_check_branch
        %130 = sbr.rel (%p127) target = $region12
      $region11: #{tpu_custom_call.1} parent=5 // pred_region
        %s131 = ssub.s32 %s11, 1
      $region12: #{tpu_custom_call.1} parent=5 // pred_fallthru
        _
      %p132 = scmp.lt.s32.totalorder %s11, 8
      // Predicated region
      $region13: #{tpu_custom_call.1} parent=5 // pred_check
        %p133 = pneg %p132
      $region14: #{tpu_custom_call.1} parent=5 // pred_check_branch
        %135 = sbr.rel (%p133) target = $region16
      $region15: #{tpu_custom_call.1} parent=5 // pred_region
        // Predicated region
        $region17: #{tpu_custom_call.1} parent=15 // pred_check
          %p136 = pneg %p51
        $region18: #{tpu_custom_call.1} parent=15 // pred_check_branch
          %138 = sbr.rel (%p136) target = $region20
        $region19: #{tpu_custom_call.1} parent=15 // pred_region
          %s139 = smul.u32 %s18, 4
          %s140 = sadd.s32 %s139, %s19
          %p141 = scmp.lt.s32.totalorder %s140, 6
          %s142 = scalar_select %p141, %s140, 6
          %s143 = smul.u32 8, %s142
          %s144 = ssub.s32 50, %s143
          %p145 = scmp.lt.s32.totalorder %s144, 8
          %s146 = scalar_select %p145, %s144, 8
          %s147 = smul.u32 8, %s146
          %p148 = scmp.lt.s32.totalorder %s143, 49
          %s149 = scalar_select %p148, %s143, 49
          %s150 = smul.addr %s149, 8
          %s151 = scalar_lea.vmem %s0, %s150
          %s152 = smul.u32 %s18, 4
          %s153 = sadd.s32 %s152, %s19
          %p154 = scmp.lt.s32.totalorder %s153, 6
          %s155 = scalar_select %p154, %s153, 6
          %s156 = smul.u32 8, %s155
          %s157 = ssub.s32 50, %s156
          %p158 = scmp.lt.s32.totalorder %s157, 8
          %s159 = scalar_select %p158, %s157, 8
          %s160 = smul.u32 8, %s159
        $region20: #{tpu_custom_call.1} parent=15 // pred_fallthru
          _
        // Predicated region
        $region21: #{tpu_custom_call.1} parent=15 // pred_check
          %p161 = pneg %p85
        $region22: #{tpu_custom_call.1} parent=15 // pred_check_branch
          %163 = sbr.rel (%p161) target = $region24
        $region23: #{tpu_custom_call.1} parent=15 // pred_region
          %s164 = smul.u32 %s18, 4
          %s165 = sadd.s32 %s164, %s19
          %p166 = scmp.lt.s32.totalorder %s165, 6
          %s167 = scalar_select %p166, %s165, 6
          %s168 = smul.u32 8, %s167
          %s169 = ssub.s32 50, %s168
          %p170 = scmp.lt.s32.totalorder %s169, 8
          %s171 = scalar_select %p170, %s169, 8
          %s172 = smul.u32 8, %s171
          %p173 = scmp.lt.s32.totalorder %s168, 49
          %s174 = scalar_select %p173, %s168, 49
          %s175 = smul.addr %s174, 8
          %s176 = scalar_lea.vmem %s1, %s175
          %s177 = smul.u32 %s18, 4
          %s178 = sadd.s32 %s177, %s19
          %p179 = scmp.lt.s32.totalorder %s178, 6
          %s180 = scalar_select %p179, %s178, 6
          %s181 = smul.u32 8, %s180
          %s182 = ssub.s32 50, %s181
          %p183 = scmp.lt.s32.totalorder %s182, 8
          %s184 = scalar_select %p183, %s182, 8
          %s185 = smul.u32 8, %s184
        $region24: #{tpu_custom_call.1} parent=15 // pred_fallthru
          _
      $region16: #{tpu_custom_call.1} parent=5 // pred_fallthru
        _
      %p186 = scmp.le.s32.totalorder 1, %s11
      %p187 = scmp.lt.s32.totalorder %s11, 9
      %p188 = pnand %p186, %p187
      %p189 = pneg %p188
      // Predicated region
      $region25: #{tpu_custom_call.1} parent=5 // pred_check
        _
      $region26: #{tpu_custom_call.1} parent=5 // pred_check_branch
        %191 = sbr.rel (%p188) target = $region28
      $region27: #{tpu_custom_call.1} parent=5 // pred_region
        %s192 = ssub.s32 %s11, 1
        %s193 = smul.u32 %s20, 4
        %s194 = sadd.s32 %s193, %s21
        %p195 = scmp.lt.s32.totalorder %s194, 6
        %s196 = scalar_select %p195, %s194, 6
        %s197 = smul.u32 8, %s196
        %s198 = ssub.s32 50, %s197
        %p199 = scmp.lt.s32.totalorder %s198, 8
        %s200 = scalar_select %p199, %s198, 8
        %s201 = smul.u32 8, %s200
        %p202 = scmp.lt.s32.totalorder %s197, 49
        %s203 = scalar_select %p202, %s197, 49
        %s204 = smul.addr %s203, 8
        %s205 = scalar_lea.vmem %s0, %s204
        %p206 = pneg %p57
        %p207 = pneg %p54
        %s208 = smul.u32 %s20, 4
        %s209 = sadd.s32 %s208, %s21
        %p210 = scmp.lt.s32.totalorder %s209, 6
        %s211 = scalar_select %p210, %s209, 6
        %s212 = smul.u32 8, %s211
        %s213 = ssub.s32 50, %s212
        %p214 = scmp.lt.s32.totalorder %s213, 8
        %s215 = scalar_select %p214, %s213, 8
        %s216 = smul.u32 8, %s215
        %p217 = scmp.lt.s32.totalorder %s212, 49
        %s218 = scalar_select %p217, %s212, 49
        %s219 = smul.addr %s218, 8
        %s220 = scalar_lea.vmem %s1, %s219
        %p221 = pneg %p91
        %p222 = pneg %p88
        %p223 = pneg %p117
        %p224 = pneg %p114
        %s225 = sand.u32 %s104, 1
        %s226 = scalar_lea.sflag [#allocation4], %s225
        %s227 = sand.u32 %s104, 1
        %s228 = smul.addr %s227, 8
        %s229 = scalar_lea.vmem [#allocation3], %s228
        %s230 = smul.u32 %s20, 4
        %s231 = sadd.s32 %s230, %s21
        %p232 = scmp.lt.s32.totalorder %s231, 6
        %s233 = scalar_select %p232, %s231, 6
        %s234 = smul.u32 8, %s233
        %s235 = ssub.s32 50, %s234
        %p236 = scmp.lt.s32.totalorder %s235, 8
        %s237 = scalar_select %p236, %s235, 8
        %s238 = smul.u32 8, %s237
        %p239 = scmp.lt.s32.totalorder %s234, 49
        %s240 = scalar_select %p239, %s234, 49
        %s241 = smul.addr %s240, 8
        %s242 = scalar_lea.vmem %s0, %s241
        %s243 = smul.u32 %s20, 4
        %s244 = sadd.s32 %s243, %s21
        %p245 = scmp.lt.s32.totalorder %s244, 6
        %s246 = scalar_select %p245, %s244, 6
        %s247 = smul.u32 8, %s246
        %s248 = ssub.s32 50, %s247
        %p249 = scmp.lt.s32.totalorder %s248, 8
        %s250 = scalar_select %p249, %s248, 8
        %s251 = smul.u32 8, %s250
        %s252 = smul.u32 %s20, 4
        %s253 = sadd.s32 %s252, %s21
        %p254 = scmp.lt.s32.totalorder %s253, 6
        %s255 = scalar_select %p254, %s253, 6
        %s256 = smul.u32 8, %s255
        %s257 = ssub.s32 50, %s256
        %p258 = scmp.lt.s32.totalorder %s257, 8
        %s259 = scalar_select %p258, %s257, 8
        %s260 = smul.u32 8, %s259
        %p261 = scmp.lt.s32.totalorder %s256, 49
        %s262 = scalar_select %p261, %s256, 49
        %s263 = smul.addr %s262, 8
        %s264 = scalar_lea.vmem %s1, %s263
        %s265 = smul.u32 %s20, 4
        %s266 = sadd.s32 %s265, %s21
        %p267 = scmp.lt.s32.totalorder %s266, 6
        %s268 = scalar_select %p267, %s266, 6
        %s269 = smul.u32 8, %s268
        %s270 = ssub.s32 50, %s269
        %p271 = scmp.lt.s32.totalorder %s270, 8
        %s272 = scalar_select %p271, %s270, 8
        %s273 = smul.u32 8, %s272
        %p274 = scmp.eq.s32.totalorder %s21, 0
        // Predicated region
        $region29: #{tpu_custom_call.1} parent=27 // pred_check
          %p275 = pneg %p274
        $region30: #{tpu_custom_call.1} parent=27 // pred_check_branch
          %277 = sbr.rel (%p275) target = $region32
        $region31: #{tpu_custom_call.1} parent=27 // pred_region
          %vm278 = vcmask 0
          %279 = vst.msk [vmem:[#allocation2] sm:$0x1] %vm278, 0.0
        $region32: #{tpu_custom_call.1} parent=27 // pred_fallthru
          _
        %v280 = vld [vmem:[%s242] sm:$0xff]
        %v281 = vld [vmem:[%s242 + $0x8] sm:$0xff]
        %v282 = vld [vmem:[%s242 + $0x10] sm:$0xff]
        %v283 = vld [vmem:[%s242 + $0x18] sm:$0xff]
        %v284 = vld [vmem:[%s242 + $0x20] sm:$0xff]
        %v285 = vld [vmem:[%s242 + $0x28] sm:$0xff]
        %v286 = vld [vmem:[%s242 + $0x30] sm:$0xff]
        %v287 = vld [vmem:[%s242 + $0x38] sm:$0xff]
        %v288 = vld [vmem:[%s264] sm:$0xff]
        %v289 = vld [vmem:[%s264 + $0x8] sm:$0xff]
        %v290 = vld [vmem:[%s264 + $0x10] sm:$0xff]
        %v291 = vld [vmem:[%s264 + $0x18] sm:$0xff]
        %v292 = vld [vmem:[%s264 + $0x20] sm:$0xff]
        %v293 = vld [vmem:[%s264 + $0x28] sm:$0xff]
        %v294 = vld [vmem:[%s264 + $0x30] sm:$0xff]
        %v295 = vld [vmem:[%s264 + $0x38] sm:$0xff]
        %296 = vmax.xlane.f32.xlu0 %v280
        %v297 = vpop.xlane.xlu0 %296
        %298 = vmax.xlane.f32.xlu0 %v281
        %v299 = vpop.xlane.xlu0 %298
        %300 = vmax.xlane.f32.xlu0 %v282
        %v301 = vpop.xlane.xlu0 %300
        %302 = vmax.xlane.f32.xlu0 %v283
        %v303 = vpop.xlane.xlu0 %302
        %304 = vmax.xlane.f32.xlu0 %v284
        %v305 = vpop.xlane.xlu0 %304
        %306 = vmax.xlane.f32.xlu0 %v285
        %v307 = vpop.xlane.xlu0 %306
        %308 = vmax.xlane.f32.xlu0 %v286
        %v309 = vpop.xlane.xlu0 %308
        %310 = vmax.xlane.f32.xlu0 %v287
        %v311 = vpop.xlane.xlu0 %310
        %v312 = vsub.f32 %v280, %v297
        %v313 = vsub.f32 %v281, %v299
        %v314 = vsub.f32 %v282, %v301
        %v315 = vsub.f32 %v283, %v303
        %v316 = vsub.f32 %v284, %v305
        %v317 = vsub.f32 %v285, %v307
        %v318 = vsub.f32 %v286, %v309
        %v319 = vsub.f32 %v287, %v311
        %v320 = vmul.f32 %v312, 1.442695
        %v321 = vpow.pop %v320
        %v322 = vmul.f32 %v313, 1.442695
        %v323 = vpow.pop %v322
        %v324 = vmul.f32 %v314, 1.442695
        %v325 = vpow.pop %v324
        %v326 = vmul.f32 %v315, 1.442695
        %v327 = vpow.pop %v326
        %v328 = vmul.f32 %v316, 1.442695
        %v329 = vpow.pop %v328
        %v330 = vmul.f32 %v317, 1.442695
        %v331 = vpow.pop %v330
        %v332 = vmul.f32 %v318, 1.442695
        %v333 = vpow.pop %v332
        %v334 = vmul.f32 %v319, 1.442695
        %v335 = vpow.pop %v334
        %336 = vadd.xlane.f32.xlu0 %v321
        %v337 = vpop.xlane.xlu0 %336
        %338 = vadd.xlane.f32.xlu0 %v323
        %v339 = vpop.xlane.xlu0 %338
        %340 = vadd.xlane.f32.xlu0 %v325
        %v341 = vpop.xlane.xlu0 %340
        %342 = vadd.xlane.f32.xlu0 %v327
        %v343 = vpop.xlane.xlu0 %342
        %344 = vadd.xlane.f32.xlu0 %v329
        %v345 = vpop.xlane.xlu0 %344
        %346 = vadd.xlane.f32.xlu0 %v331
        %v347 = vpop.xlane.xlu0 %346
        %348 = vadd.xlane.f32.xlu0 %v333
        %v349 = vpop.xlane.xlu0 %348
        %350 = vadd.xlane.f32.xlu0 %v335
        %v351 = vpop.xlane.xlu0 %350
        %v352 = vlog2.pop %v337
        %v353 = vmul.f32 %v352, 0.6931472
        %v354 = vlog2.pop %v339
        %v355 = vmul.f32 %v354, 0.6931472
        %v356 = vlog2.pop %v341
        %v357 = vmul.f32 %v356, 0.6931472
        %v358 = vlog2.pop %v343
        %v359 = vmul.f32 %v358, 0.6931472
        %v360 = vlog2.pop %v345
        %v361 = vmul.f32 %v360, 0.6931472
        %v362 = vlog2.pop %v347
        %v363 = vmul.f32 %v362, 0.6931472
        %v364 = vlog2.pop %v349
        %v365 = vmul.f32 %v364, 0.6931472
        %v366 = vlog2.pop %v351
        %v367 = vmul.f32 %v366, 0.6931472
        %v368 = vadd.f32 %v297, %v353
        %v369 = vadd.f32 %v299, %v355
        %v370 = vadd.f32 %v301, %v357
        %v371 = vadd.f32 %v303, %v359
        %v372 = vadd.f32 %v305, %v361
        %v373 = vadd.f32 %v307, %v363
        %v374 = vadd.f32 %v309, %v365
        %v375 = vadd.f32 %v311, %v367
        %v376 = vlaneseq
        %v377 = vand.u32 %v376, 127
        %378 = vset.pattern.permute.xlu0 0
        %379 = vperm.xlu0 %378, %v288
        %v380 = vpop.permute.xlu0 %379
        %381 = vset.pattern.permute.xlu0 0
        %382 = vperm.xlu0 %381, %v289
        %v383 = vpop.permute.xlu0 %382
        %384 = vset.pattern.permute.xlu0 0
        %385 = vperm.xlu0 %384, %v290
        %v386 = vpop.permute.xlu0 %385
        %387 = vset.pattern.permute.xlu0 0
        %388 = vperm.xlu0 %387, %v291
        %v389 = vpop.permute.xlu0 %388
        %390 = vset.pattern.permute.xlu0 0
        %391 = vperm.xlu0 %390, %v292
        %v392 = vpop.permute.xlu0 %391
        %393 = vset.pattern.permute.xlu0 0
        %394 = vperm.xlu0 %393, %v293
        %v395 = vpop.permute.xlu0 %394
        %396 = vset.pattern.permute.xlu0 0
        %397 = vperm.xlu0 %396, %v294
        %v398 = vpop.permute.xlu0 %397
        %399 = vset.pattern.permute.xlu0 0
        %400 = vperm.xlu0 %399, %v295
        %v401 = vpop.permute.xlu0 %400
        %vm402 = vcmp.eq.s32.totalorder %v377, %v380
        %vm403 = vcmp.eq.s32.totalorder %v377, %v383
        %vm404 = vcmp.eq.s32.totalorder %v377, %v386
        %vm405 = vcmp.eq.s32.totalorder %v377, %v389
        %vm406 = vcmp.eq.s32.totalorder %v377, %v392
        %vm407 = vcmp.eq.s32.totalorder %v377, %v395
        %vm408 = vcmp.eq.s32.totalorder %v377, %v398
        %vm409 = vcmp.eq.s32.totalorder %v377, %v401
        %v410 = vsel %vm402, 0.9007813, 0.00078125
        %v411 = vsel %vm403, 0.9007813, 0.00078125
        %v412 = vsel %vm404, 0.9007813, 0.00078125
        %v413 = vsel %vm405, 0.9007813, 0.00078125
        %v414 = vsel %vm406, 0.9007813, 0.00078125
        %v415 = vsel %vm407, 0.9007813, 0.00078125
        %v416 = vsel %vm408, 0.9007813, 0.00078125
        %v417 = vsel %vm409, 0.9007813, 0.00078125
        %v418 = vmul.f32 %v280, %v410
        %v419 = vmul.f32 %v281, %v411
        %v420 = vmul.f32 %v282, %v412
        %v421 = vmul.f32 %v283, %v413
        %v422 = vmul.f32 %v284, %v414
        %v423 = vmul.f32 %v285, %v415
        %v424 = vmul.f32 %v286, %v416
        %v425 = vmul.f32 %v287, %v417
        %426 = vadd.xlane.f32.xlu0 %v418
        %v427 = vpop.xlane.xlu0 %426
        %428 = vadd.xlane.f32.xlu0 %v419
        %v429 = vpop.xlane.xlu0 %428
        %430 = vadd.xlane.f32.xlu0 %v420
        %v431 = vpop.xlane.xlu0 %430
        %432 = vadd.xlane.f32.xlu0 %v421
        %v433 = vpop.xlane.xlu0 %432
        %434 = vadd.xlane.f32.xlu0 %v422
        %v435 = vpop.xlane.xlu0 %434
        %436 = vadd.xlane.f32.xlu0 %v423
        %v437 = vpop.xlane.xlu0 %436
        %438 = vadd.xlane.f32.xlu0 %v424
        %v439 = vpop.xlane.xlu0 %438
        %440 = vadd.xlane.f32.xlu0 %v425
        %v441 = vpop.xlane.xlu0 %440
        %v442 = vsub.f32 %v368, %v427
        %v443 = vsub.f32 %v369, %v429
        %v444 = vsub.f32 %v370, %v431
        %v445 = vsub.f32 %v371, %v433
        %v446 = vsub.f32 %v372, %v435
        %v447 = vsub.f32 %v373, %v437
        %v448 = vsub.f32 %v374, %v439
        %v449 = vsub.f32 %v375, %v441
        %s450 = smul.u32 %s20, 4
        %s451 = sadd.s32 %s450, %s21
        %s452 = smul.u32 %s451, 64
        %v453 = vlaneseq
        %v454 = vshrl.u32 %v453, 7
        %v455 = vadd.s32 %v454, 8
        %v456 = vadd.s32 %v454, 16
        %v457 = vadd.s32 %v454, 24
        %v458 = vadd.s32 %v454, 32
        %v459 = vadd.s32 %v454, 40
        %v460 = vadd.s32 %v454, 48
        %v461 = vadd.s32 %v454, 56
        %v462 = vstv %s452
        %v463 = vadd.s32 %v462, %v454
        %v464 = vadd.s32 %v462, %v455
        %v465 = vadd.s32 %v462, %v456
        %v466 = vadd.s32 %v462, %v457
        %v467 = vadd.s32 %v462, %v458
        %v468 = vadd.s32 %v462, %v459
        %v469 = vadd.s32 %v462, %v460
        %v470 = vadd.s32 %v462, %v461
        %vm471 = vcmp.lt.s32.totalorder %v463, 400
        %vm472 = vcmp.lt.s32.totalorder %v464, 400
        %vm473 = vcmp.lt.s32.totalorder %v465, 400
        %vm474 = vcmp.lt.s32.totalorder %v466, 400
        %vm475 = vcmp.lt.s32.totalorder %v467, 400
        %vm476 = vcmp.lt.s32.totalorder %v468, 400
        %vm477 = vcmp.lt.s32.totalorder %v469, 400
        %vm478 = vcmp.lt.s32.totalorder %v470, 400
        %v479 = vsel %vm471, %v442, 0.0
        %v480 = vsel %vm472, %v443, 0.0
        %v481 = vsel %vm473, %v444, 0.0
        %v482 = vsel %vm474, %v445, 0.0
        %v483 = vsel %vm475, %v446, 0.0
        %v484 = vsel %vm476, %v447, 0.0
        %v485 = vsel %vm477, %v448, 0.0
        %v486 = vsel %vm478, %v449, 0.0
        %v487 = vld [vmem:[#allocation2] sm:$0x1]
        %v488 = vadd.f32 %v479, %v480
        %v489 = vadd.f32 %v488, %v481
        %v490 = vadd.f32 %v489, %v482
        %v491 = vadd.f32 %v490, %v483
        %v492 = vadd.f32 %v491, %v484
        %v493 = vadd.f32 %v492, %v485
        %v494 = vadd.f32 %v493, %v486
        %v495 = vrot.slane %v494, 4
        %v496 = vadd.f32 %v494, %v495
        %v497 = vrot.slane %v496, 2
        %v498 = vadd.f32 %v496, %v497
        %v499 = vrot.slane %v498, 1
        %v500 = vadd.f32 %v498, %v499
        %v501 = vadd.f32 %v487, %v500
        %vm502 = vcmask 0
        %503 = vst.msk [vmem:[#allocation2] sm:$0x1] %vm502, %v501
        %p504 = scmp.eq.s32.totalorder %s21, 3
        // Predicated region
        $region33: #{tpu_custom_call.1} parent=27 // pred_check
          %p505 = pneg %p504
        $region34: #{tpu_custom_call.1} parent=27 // pred_check_branch
          %507 = sbr.rel (%p505) target = $region36
        $region35: #{tpu_custom_call.1} parent=27 // pred_region
          %vm508 = vcmp.eq.s32.totalorder %v454, 0
          %vm509 = vcmp.eq.s32.totalorder %v377, 0
          %vm510 = vmand %vm508, %vm509
          %v511 = vld [vmem:[#allocation2] sm:$0x1]
          %v512 = vmul.f32 %v511, 0.0025
          %v514 = vperm.slane %v512, 0
          %515 = vset.pattern.permute.xlu0 0
          %516 = vperm.xlu0 %515, %v514
          %v517 = vpop.permute.xlu0 %516
          %v519 = vsel %vm510, %v517, 0.0
          %520 = vst [vmem:[%s229] sm:$0xff] %v519
        $region36: #{tpu_custom_call.1} parent=27 // pred_fallthru
          _
        %s521 = sand.u32 %s104, 1
        %s522 = scalar_lea.sflag [#allocation4], %s521
        %s523 = sand.u32 %s104, 1
        %s524 = smul.addr %s523, 8
        %s525 = scalar_lea.vmem [#allocation3], %s524
        // Predicated region
        $region37: #{tpu_custom_call.1} parent=27 // pred_check
          %p526 = pneg %p114
        $region38: #{tpu_custom_call.1} parent=27 // pred_check_branch
          %528 = sbr.rel (%p526) target = $region40
        $region39: #{tpu_custom_call.1} parent=27 // pred_region
          %530 = vsyncadd %s522, 0
          %s531 = smul.addr %s20, 8
          %s532 = scalar_lea.hbm %s2, %s531
          %s534 = sshll.u32 %s525, 4
          %s535 = int_to_ptr.vmem [resolvable:$true] %s534
          %s536 = sshll.u32 %s532, 4
          %s537 = int_to_ptr.hbm [resolvable:$true] %s536
          %539 = dma.vmem_to_hbm [thread:$0]  %s535, 128, %s537, %s522
        $region40: #{tpu_custom_call.1} parent=27 // pred_fallthru
          _
      $region28: #{tpu_custom_call.1} parent=5 // pred_fallthru
        _
      %p540 = scmp.le.s32.totalorder 2, %s11
      // Predicated region
      $region41: #{tpu_custom_call.1} parent=5 // pred_check
        %p541 = pneg %p540
      $region42: #{tpu_custom_call.1} parent=5 // pred_check_branch
        %543 = sbr.rel (%p541) target = $region44
      $region43: #{tpu_custom_call.1} parent=5 // pred_region
        %s544 = ssub.s32 %s11, 2
        // Predicated region
        $region45: #{tpu_custom_call.1} parent=43 // pred_check
          %p545 = pneg %p120
        $region46: #{tpu_custom_call.1} parent=43 // pred_check_branch
          %547 = sbr.rel (%p545) target = $region48
        $region47: #{tpu_custom_call.1} parent=43 // pred_region
          %s548 = sand.u32 %s105, 1
          %s549 = scalar_lea.sflag [#allocation4], %s548
          %s550 = sand.u32 %s105, 1
          %s551 = smul.addr %s550, 8
          %s552 = scalar_lea.vmem [#allocation3], %s551
          %554 = dma.done %s549, 128
        $region48: #{tpu_custom_call.1} parent=43 // pred_fallthru
          _
      $region44: #{tpu_custom_call.1} parent=5 // pred_fallthru
        _
    $region6: #{tpu_custom_call.1} parent=1 // loop_footer
      %s15 = sadd.s32 1, %s11
    $region7: #{tpu_custom_call.1} parent=1 // loop_footer_branch
      %10 = sbr.rel target = $region3
    $region8: #{tpu_custom_call.1} parent=1 // loop_exit
      _
    %555 = vsyncpa [#allocation4], 1
    %s556 = scalar_lea.sflag [#allocation4], 1
    %557 = vsyncpa %s556, 1

</llo_original>
